<compile_context>
chip_gen: v5e
topology: v5e:2x2
jax: 0.10.0
libtpu: 0.0.40
codegen_flags: <defaults>
</compile_context>

<pallas_src>
import jax
import jax.numpy as jnp
from jax.experimental import pallas as pl
from jax.experimental.pallas import tpu as pltpu

LANE = 128     # lane width; batch tile / stores stay multiples of this
CHUNK = 1024   # lanes per inner compute chunk; h = (H=32, CHUNK) f32 = 32 vregs


def _round_up(a, m):
    return (a + m - 1) // m * m


def mlp_kernel(x_ref, w1_ref, b1_ref, w2_ref, b2_ref, out_ref):
    # x_ref: (T, TB)  w1_ref: (H, T)  b1_ref: (H, 1)  w2_ref: (O, H)  b2_ref: (O, 1)
    # out_ref: (O, TB) -- batch on lanes: lane-dense loads, EUP work, and stores.
    hp = jax.lax.Precision.HIGHEST
    w1 = w1_ref[...]
    b1 = b1_ref[...]
    w2 = w2_ref[...]
    b2 = b2_ref[...]

    tb = x_ref.shape[1]
    ch = min(CHUNK, tb)
    n_chunks = tb // ch            # wrapper guarantees tb % ch == 0 (static)

    def chunk_body(c, carry):
        col = pl.multiple_of(c * ch, ch)
        x = x_ref[:, pl.ds(col, ch)]                                    # (T, ch)
        h = jnp.dot(w1, x, precision=hp,
                    preferred_element_type=jnp.float32) + b1            # (H, ch)
        # sigmoid(z) = 0.5 * tanh(z / 2) + 0.5 : one EUP transcendental per element
        h = 0.5 * jnp.tanh(0.5 * h) + 0.5
        p = jnp.dot(w2, h, precision=hp,
                    preferred_element_type=jnp.float32) + b2            # (O, ch)
        out_ref[:, pl.ds(col, ch)] = p.astype(out_ref.dtype)
        return carry

    jax.lax.fori_loop(0, n_chunks, chunk_body, 0, unroll=min(n_chunks, 4))


def mlp_forward_tb(x_t, w1, b1, w2, b2, *, tb_max=65536):
    """Core forward pass, transpose-free boundary.

    x_t: (T, B) float32   (batch already on the fast axis)
    w1:  (H, T)  b1: (H,)   w2: (O, H)  b2: (O,)   (PyTorch nn.Linear layouts, unchanged)
    returns: (O, B) float32
    """
    T, B = x_t.shape
    H = w1.shape[0]
    O = w2.shape[0]

    # --- batch tiling -------------------------------------------------------
    tb_max = max(LANE, (int(tb_max) // LANE) * LANE)   # keep lane-dense stores
    Bq = _round_up(B, LANE)
    n = pl.cdiv(Bq, tb_max)
    if n < 4:
        # v7x megacore: prefer >=2 grid steps per TensorCore, but never shrink a
        # step below ~16K lanes (that is back in the per-step-overhead regime).
        n = min(4, pl.cdiv(Bq, 16384))
    n = max(n, 1)
    TB = _round_up(pl.cdiv(Bq, n), LANE)
    if TB > CHUNK:
        TB = _round_up(TB, CHUNK)                      # kernel sub-chunking divides evenly
    n = pl.cdiv(Bq, TB)
    Bp = n * TB

    if Bp != B:
        x_t = jnp.pad(x_t, ((0, 0), (0, Bp - B)))

    b1c = b1.reshape(H, 1)
    b2c = b2.reshape(O, 1)

    cost = pl.CostEstimate(
        flops=2 * Bp * (T * H + H * O),
        transcendentals=Bp * H,                        # one tanh per hidden element
        bytes_accessed=4 * (Bp * T + Bp * O + H * T + O * H + H + O),
    )

    out_t = pl.pallas_call(
        mlp_kernel,
        out_shape=jax.ShapeDtypeStruct((O, Bp), jnp.float32),
        grid=(n,),
        in_specs=[
            pl.BlockSpec((T, TB), lambda i: (0, i)),   # x^T tile, pipelined over batch
            pl.BlockSpec((H, T), lambda i: (0, 0)),    # W1 resident in VMEM
            pl.BlockSpec((H, 1), lambda i: (0, 0)),    # b1 resident
            pl.BlockSpec((O, H), lambda i: (0, 0)),    # W2 resident
            pl.BlockSpec((O, 1), lambda i: (0, 0)),    # b2 resident
        ],
        out_specs=pl.BlockSpec((O, TB), lambda i: (0, i)),   # lane-dense output slab
        compiler_params=pltpu.CompilerParams(
            dimension_semantics=("parallel",),
        ),
        cost_estimate=cost,
    )(x_t, w1, b1c, w2, b2c)

    if Bp != B:
        out_t = out_t[:, :B]
    return out_t


def mlp_forward(x, w1, b1, w2, b2, *, tb_max=65536):
    """PyTorch-module-compatible forward: x (B, T) or (B, T, D) -> (B, O).

    The (B, .) <-> (., B) boundary transposes below are the only non-kernel HBM passes;
    layout-aware callers should use mlp_forward_tb directly to avoid them entirely.
    """
    if x.ndim > 2:
        x = x[:, :, -1]              # same semantics as the PyTorch module
    out_t = mlp_forward_tb(x.T, w1, b1, w2, b2, tb_max=tb_max)
    return out_t.T


def reference_forward(x, w1, b1, w2, b2):
    if x.ndim > 2:
        x = x[:, :, -1]
    hp = jax.lax.Precision.HIGHEST
    h = jax.nn.sigmoid(jnp.dot(x, w1.T, precision=hp) + b1)
    return jnp.dot(h, w2.T, precision=hp) + b2


if __name__ == "__main__":
    # Small shapes consistent with the module's forward:
    #   timesteps (Input_dim) = 8, hidden_size = 32, output_dim = 4, feature dim = 3
    B, T, D, H, O = 2, 8, 3, 32, 4

    key = jax.random.PRNGKey(0)
    kx, kw1, kb1, kw2, kb2 = jax.random.split(key, 5)

    x = jax.random.normal(kx, (B, T, D), dtype=jnp.float32)
    # Deterministic parameter init (uniform, roughly like PyTorch's default scale).
    w1 = jax.random.uniform(kw1, (H, T), minval=-1.0 / T ** 0.5, maxval=1.0 / T ** 0.5)
    b1 = jax.random.uniform(kb1, (H,), minval=-1.0 / T ** 0.5, maxval=1.0 / T ** 0.5)
    w2 = jax.random.uniform(kw2, (O, H), minval=-1.0 / H ** 0.5, maxval=1.0 / H ** 0.5)
    b2 = jax.random.uniform(kb2, (O,), minval=-1.0 / H ** 0.5, maxval=1.0 / H ** 0.5)

    # 3-D input path (module semantics: keep x[:, :, -1]).
    out = mlp_forward(x, w1, b1, w2, b2)
    jax.block_until_ready(out)
    ref = reference_forward(x, w1, b1, w2, b2)
    assert out.shape == (B, O)
    assert jnp.allclose(out, ref, atol=1e-5, rtol=1e-5), "mismatch vs reference (3-D input)"

    # 2-D input path with a non-multiple-of-128 batch (exercises padding + slicing).
    B2 = 260
    x2 = jax.random.normal(jax.random.PRNGKey(1), (B2, T), dtype=jnp.float32)
    out2 = mlp_forward(x2, w1, b1, w2, b2)
    jax.block_until_ready(out2)
    ref2 = reference_forward(x2, w1, b1, w2, b2)
    assert out2.shape == (B2, O)
    assert jnp.allclose(out2, ref2, atol=1e-5, rtol=1e-5), "mismatch vs reference (2-D input)"

    # Transpose-free core boundary (the recommended entry point).
    out3 = mlp_forward_tb(x2.T, w1, b1, w2, b2)
    jax.block_until_ready(out3)
    assert out3.shape == (O, B2)
    assert jnp.allclose(out3, ref2.T, atol=1e-5, rtol=1e-5), "mismatch vs reference (T,B path)"

    print("KERNEL_OK")
</pallas_src>

<mosaic_0001>
module attributes {stable_mosaic.version = 11 : i64} {
  func.func @mlp_kernel(%arg0: i32, %arg1: memref<8x128xf32, #tpu.memory_space<vmem>>, %arg2: memref<32x8xf32, #tpu.memory_space<vmem>>, %arg3: memref<32x1xf32, #tpu.memory_space<vmem>>, %arg4: memref<4x32xf32, #tpu.memory_space<vmem>>, %arg5: memref<4x1xf32, #tpu.memory_space<vmem>>, %arg6: memref<4x128xf32, #tpu.memory_space<vmem>>) attributes {dimension_semantics = [#tpu.dimension_semantics<parallel>], iteration_bounds = array<i64: 1>, scalar_prefetch = 0 : i64, scratch_operands = 0 : i64, tpu.core_type = #tpu.core_type<tc>, window_params = [{transform_indices = @transform_0, window_bounds = array<i64: 8, 128>}, {pipeline_mode = #tpu.pipeline_mode<synchronous>, transform_indices = @transform_1, window_bounds = array<i64: 32, 8>}, {pipeline_mode = #tpu.pipeline_mode<synchronous>, transform_indices = @transform_2, window_bounds = array<i64: 32, 1>}, {pipeline_mode = #tpu.pipeline_mode<synchronous>, transform_indices = @transform_3, window_bounds = array<i64: 4, 32>}, {pipeline_mode = #tpu.pipeline_mode<synchronous>, transform_indices = @transform_4, window_bounds = array<i64: 4, 1>}, {transform_indices = @transform_5, window_bounds = array<i64: 4, 128>}]} {
    %c0 = arith.constant 0 : index
    %c0_0 = arith.constant 0 : index
    %0 = vector.load %arg2[%c0, %c0_0] : memref<32x8xf32, #tpu.memory_space<vmem>>, vector<32x8xf32>
    %c0_1 = arith.constant 0 : index
    %c0_2 = arith.constant 0 : index
    %1 = vector.load %arg3[%c0_1, %c0_2] : memref<32x1xf32, #tpu.memory_space<vmem>>, vector<32x1xf32>
    %c0_3 = arith.constant 0 : index
    %c0_4 = arith.constant 0 : index
    %2 = vector.load %arg4[%c0_3, %c0_4] : memref<4x32xf32, #tpu.memory_space<vmem>>, vector<4x32xf32>
    %c0_5 = arith.constant 0 : index
    %c0_6 = arith.constant 0 : index
    %3 = vector.load %arg5[%c0_5, %c0_6] : memref<4x1xf32, #tpu.memory_space<vmem>>, vector<4x1xf32>
    %c0_i32 = arith.constant 0 : i32
    %c128_i32 = arith.constant 128 : i32
    %4 = arith.muli %c0_i32, %c128_i32 : i32
    %5 = tpu.assume_multiple %4, 128 : i32
    %c0_7 = arith.constant 0 : index
    %6 = arith.index_cast %5 : i32 to index
    %7 = vector.load %arg1[%c0_7, %6] : memref<8x128xf32, #tpu.memory_space<vmem>>, vector<8x128xf32>
    %cst = arith.constant dense<0.000000e+00> : vector<32x128xf32>
    %8 = tpu.matmul %0, %7, %cst {dimension_numbers = #tpu.dot_dimension_numbers<[1], [0], [0], [1], [0, 0, 1, 1], [], []>, precision = #tpu.contract_precision<fp32>} : vector<32x8xf32>, vector<8x128xf32>, vector<32x128xf32> -> vector<32x128xf32>
    %9 = vector.broadcast %1 : vector<32x1xf32> to vector<32x128xf32>
    %10 = arith.addf %8, %9 : vector<32x128xf32>
    %cst_8 = arith.constant 5.000000e-01 : f32
    %11 = vector.broadcast %cst_8 : f32 to vector<32x128xf32>
    %12 = arith.mulf %11, %10 : vector<32x128xf32>
    %13 = math.tanh %12 : vector<32x128xf32>
    %cst_9 = arith.constant 5.000000e-01 : f32
    %14 = vector.broadcast %cst_9 : f32 to vector<32x128xf32>
    %15 = arith.mulf %14, %13 : vector<32x128xf32>
    %cst_10 = arith.constant 5.000000e-01 : f32
    %16 = vector.broadcast %cst_10 : f32 to vector<32x128xf32>
    %17 = arith.addf %15, %16 : vector<32x128xf32>
    %cst_11 = arith.constant dense<0.000000e+00> : vector<4x128xf32>
    %18 = tpu.matmul %2, %17, %cst_11 {dimension_numbers = #tpu.dot_dimension_numbers<[1], [0], [0], [1], [0, 0, 1, 1], [], []>, precision = #tpu.contract_precision<fp32>} : vector<4x32xf32>, vector<32x128xf32>, vector<4x128xf32> -> vector<4x128xf32>
    %19 = vector.broadcast %3 : vector<4x1xf32> to vector<4x128xf32>
    %20 = arith.addf %18, %19 : vector<4x128xf32>
    %c0_12 = arith.constant 0 : index
    %21 = arith.index_cast %5 : i32 to index
    %22 = vector.load %arg6[%c0_12, %21] : memref<4x128xf32, #tpu.memory_space<vmem>>, vector<4x128xf32>
    tpu.vector_store %arg6[%c0_12, %21], %20 {strides = array<i32>} : memref<4x128xf32, #tpu.memory_space<vmem>>, vector<4x128xf32>,
    %c1_i32 = arith.constant 1 : i32
    return
  }
  func.func @transform_0(%arg0: i32) -> (i32, i32) {
    %c0_i32 = arith.constant 0 : i32
    %c0_i32_0 = arith.constant 0 : i32
    return %c0_i32, %arg0 : i32, i32
  }
  func.func @transform_1(%arg0: i32) -> (i32, i32) {
    %c0_i32 = arith.constant 0 : i32
    %c0_i32_0 = arith.constant 0 : i32
    %c0_i32_1 = arith.constant 0 : i32
    return %c0_i32, %c0_i32_0 : i32, i32
  }
  func.func @transform_2(%arg0: i32) -> (i32, i32) {
    %c0_i32 = arith.constant 0 : i32
    %c0_i32_0 = arith.constant 0 : i32
    %c0_i32_1 = arith.constant 0 : i32
    return %c0_i32, %c0_i32_0 : i32, i32
  }
  func.func @transform_3(%arg0: i32) -> (i32, i32) {
    %c0_i32 = arith.constant 0 : i32
    %c0_i32_0 = arith.constant 0 : i32
    %c0_i32_1 = arith.constant 0 : i32
    return %c0_i32, %c0_i32_0 : i32, i32
  }
  func.func @transform_4(%arg0: i32) -> (i32, i32) {
    %c0_i32 = arith.constant 0 : i32
    %c0_i32_0 = arith.constant 0 : i32
    %c0_i32_1 = arith.constant 0 : i32
    return %c0_i32, %c0_i32_0 : i32, i32
  }
  func.func @transform_5(%arg0: i32) -> (i32, i32) {
    %c0_i32 = arith.constant 0 : i32
    %c0_i32_0 = arith.constant 0 : i32
    return %c0_i32, %arg0 : i32, i32
  }
}

</mosaic_0001>

<llo_original>
// kernel: tpu_custom_call.1
$region0: #{tpu_custom_call.1}
  #allocation0 [shape = 'u32[]', space=smem, size = 0x4, offset = 0x4, fixed_abs, tag = 'smem constant byte address 0x4 - core index']
  #allocation1 [shape = 'u32[72,128]{1,0:T(1,128)}', space=vmem, size = 0x9000, scoped, tag = 'internal scratch']
  %s0 = inlined_call_operand.vmem [shape: f32[8,128], index: 0, kind: input, shape index: {}]
  %s1 = inlined_call_operand.vmem [shape: f32[32,8], index: 1, kind: input, shape index: {}]
  %s2 = inlined_call_operand.vmem [shape: f32[32,1], index: 2, kind: input, shape index: {}]
  %s3 = inlined_call_operand.vmem [shape: f32[4,32], index: 3, kind: input, shape index: {}]
  %s4 = inlined_call_operand.vmem [shape: f32[4,1], index: 4, kind: input, shape index: {}]
  %s5 = inlined_call_operand.hbm [shape: f32[4,128], index: 5, kind: output, shape index: {}]
  %s6 = sld [smem:[#allocation0]]
  $region30: #{tpu_custom_call.1} parent=0
    _
  %s8 = ssub.s32 1, %s6
  %s9 = scalar_select 0, %s8, %s6
  $region1: #{tpu_custom_call.1} parent=0
    #allocation2 [shape = 'u8[2048]{0}', space=vmem, size = 0x800, scoped, tag = 'output window, operand 0, single buffered']
    #allocation3 [shape = 's32[1]{0}', space=sflag, size = 0x4, scoped, tag = 'scoped memory for tpu_custom_call.1']
    %10 = vsyncpa [#allocation3], 0
    // Predicated region
    $region2: #{tpu_custom_call.1} parent=1 // pred_check
      _
    $region3: #{tpu_custom_call.1} parent=1 // pred_check_branch
      %12 = sbr.rel (0) target = $region5
    $region4: #{tpu_custom_call.1} parent=1 // pred_region
      _
    $region5: #{tpu_custom_call.1} parent=1 // pred_fallthru
      _
    // Predicated region
    $region6: #{tpu_custom_call.1} parent=1 // pred_check
      _
    $region7: #{tpu_custom_call.1} parent=1 // pred_check_branch
      %14 = sbr.rel (0) target = $region9
    $region8: #{tpu_custom_call.1} parent=1 // pred_region
      _
    $region9: #{tpu_custom_call.1} parent=1 // pred_fallthru
      _
    // Predicated region
    $region10: #{tpu_custom_call.1} parent=1 // pred_check
      _
    $region11: #{tpu_custom_call.1} parent=1 // pred_check_branch
      %16 = sbr.rel (0) target = $region13
    $region12: #{tpu_custom_call.1} parent=1 // pred_region
      _
    $region13: #{tpu_custom_call.1} parent=1 // pred_fallthru
      _
    // Predicated region
    $region14: #{tpu_custom_call.1} parent=1 // pred_check
      _
    $region15: #{tpu_custom_call.1} parent=1 // pred_check_branch
      %18 = sbr.rel (0) target = $region17
    $region16: #{tpu_custom_call.1} parent=1 // pred_region
      _
    $region17: #{tpu_custom_call.1} parent=1 // pred_fallthru
      _
    // Predicated region
    $region18: #{tpu_custom_call.1} parent=1 // pred_check
      _
    $region19: #{tpu_custom_call.1} parent=1 // pred_check_branch
      %20 = sbr.rel (0) target = $region21
    $region20: #{tpu_custom_call.1} parent=1 // pred_region
      _
    $region21: #{tpu_custom_call.1} parent=1 // pred_fallthru
      _
    %v21 = vld [vmem:[%s1] sm:$0xff]
    %v22 = vld [vmem:[%s1 + $0x8] sm:$0xff]
    %v23 = vld [vmem:[%s1 + $0x10] sm:$0xff]
    %v24 = vld [vmem:[%s1 + $0x18] sm:$0xff]
    %v25 = vld [vmem:[%s2] sm:$0xff]
    %v26 = vld [vmem:[%s2 + $0x8] sm:$0xff]
    %v27 = vld [vmem:[%s2 + $0x10] sm:$0xff]
    %v28 = vld [vmem:[%s2 + $0x18] sm:$0xff]
    %v29 = vld [vmem:[%s3] sm:$0xf]
    %v30 = vld [vmem:[%s4] sm:$0xf]
    %v31 = vld [vmem:[%s0] sm:$0xff]
    %33 = vset.pattern.permute.xlu0 0
    %34 = vperm.xlu0 %33, %v25
    %v35 = vpop.permute.xlu0 %34
    %38 = vset.pattern.permute.xlu0 0
    %39 = vperm.xlu0 %38, %v26
    %v40 = vpop.permute.xlu0 %39
    %43 = vset.pattern.permute.xlu0 0
    %44 = vperm.xlu0 %43, %v27
    %v45 = vpop.permute.xlu0 %44
    %48 = vset.pattern.permute.xlu0 0
    %49 = vperm.xlu0 %48, %v28
    %v50 = vpop.permute.xlu0 %49
    %vm52 = vcmask 64512
    %v54 = vsel %vm52, %v21, 0
    %v57 = vsel %vm52, %v22, 0
    %v60 = vsel %vm52, %v23, 0
    %v63 = vsel %vm52, %v24, 0
    %65 = vmatpush.msra.mxu0 0.0
    %66 = vmatpush.msra.mxu0 0.0
    %67 = vmatpush.msra.mxu0 0.0
    %68 = vmatpush.msra.mxu0 0.0
    %69 = vmatpush.msra.mxu0 0.0
    %70 = vmatpush.msra.mxu0 0.0
    %71 = vmatpush.msra.mxu0 0.0
    %72 = vmatpush.msra.mxu0 0.0
    %73 = vmatpush.msra.mxu0 0.0
    %74 = vmatpush.msra.mxu0 0.0
    %75 = vmatpush.msra.mxu0 0.0
    %76 = vmatpush.msra.mxu0 0.0
    %77 = vmatpush.msra.mxu0 0.0
    %78 = vmatpush.msra.mxu0 0.0
    %79 = vmatpush.msra.mxu0 0.0
    %v80 = vand.u32 %v31, 4294901760
    %81 = vmatpush.msra.mxu0 %v80
    %v82 = vand.u32 %v54, 4294901760
    %v83 = vsub.f32 %v54, %v82
    %v84 = vand.u32 %v83, 4294901760
    %v85 = vsub.f32 %v83, %v84
    %v86 = vand.u32 %v85, 4294901760
    %87 = vmatmul.f32.gmra.mxu0 %v86
    %v88 = vpop.f32.mrf.mxu0
    %v89 = vadd.f32 %v35, %v88
    %v90 = vand.u32 %v57, 4294901760
    %v91 = vsub.f32 %v57, %v90
    %v92 = vand.u32 %v91, 4294901760
    %v93 = vsub.f32 %v91, %v92
    %v94 = vand.u32 %v93, 4294901760
    %95 = vmatmul.f32.gmra.mxu0 %v94
    %v96 = vpop.f32.mrf.mxu0
    %v97 = vadd.f32 %v40, %v96
    %v98 = vand.u32 %v60, 4294901760
    %v99 = vsub.f32 %v60, %v98
    %v100 = vand.u32 %v99, 4294901760
    %v101 = vsub.f32 %v99, %v100
    %v102 = vand.u32 %v101, 4294901760
    %103 = vmatmul.f32.gmra.mxu0 %v102
    %v104 = vpop.f32.mrf.mxu0
    %v105 = vadd.f32 %v45, %v104
    %v106 = vand.u32 %v63, 4294901760
    %v107 = vsub.f32 %v63, %v106
    %v108 = vand.u32 %v107, 4294901760
    %v109 = vsub.f32 %v107, %v108
    %v110 = vand.u32 %v109, 4294901760
    %111 = vmatmul.f32.gmra.mxu0 %v110
    %v112 = vpop.f32.mrf.mxu0
    %v113 = vadd.f32 %v50, %v112
    %114 = vdwg.mxu0
    %115 = vmatpush.msra.mxu0 0.0
    %116 = vmatpush.msra.mxu0 0.0
    %117 = vmatpush.msra.mxu0 0.0
    %118 = vmatpush.msra.mxu0 0.0
    %119 = vmatpush.msra.mxu0 0.0
    %120 = vmatpush.msra.mxu0 0.0
    %121 = vmatpush.msra.mxu0 0.0
    %122 = vmatpush.msra.mxu0 0.0
    %123 = vmatpush.msra.mxu0 0.0
    %124 = vmatpush.msra.mxu0 0.0
    %125 = vmatpush.msra.mxu0 0.0
    %126 = vmatpush.msra.mxu0 0.0
    %127 = vmatpush.msra.mxu0 0.0
    %128 = vmatpush.msra.mxu0 0.0
    %129 = vmatpush.msra.mxu0 0.0
    %v130 = vand.u32 %v31, 4294901760
    %v131 = vsub.f32 %v31, %v130
    %v132 = vand.u32 %v131, 4294901760
    %v133 = vsub.f32 %v131, %v132
    %v134 = vand.u32 %v133, 4294901760
    %135 = vmatpush.msra.mxu0 %v134
    %v136 = vand.u32 %v54, 4294901760
    %137 = vmatmul.f32.gmra.mxu0 %v136
    %v138 = vpop.f32.mrf.mxu0
    %v139 = vadd.f32 %v89, %v138
    %v140 = vand.u32 %v57, 4294901760
    %141 = vmatmul.f32.gmra.mxu0 %v140
    %v142 = vpop.f32.mrf.mxu0
    %v143 = vadd.f32 %v97, %v142
    %v144 = vand.u32 %v60, 4294901760
    %145 = vmatmul.f32.gmra.mxu0 %v144
    %v146 = vpop.f32.mrf.mxu0
    %v147 = vadd.f32 %v105, %v146
    %v148 = vand.u32 %v63, 4294901760
    %149 = vmatmul.f32.gmra.mxu0 %v148
    %v150 = vpop.f32.mrf.mxu0
    %v151 = vadd.f32 %v113, %v150
    %152 = vdwg.mxu0
    %153 = vmatpush.msra.mxu0 0.0
    %154 = vmatpush.msra.mxu0 0.0
    %155 = vmatpush.msra.mxu0 0.0
    %156 = vmatpush.msra.mxu0 0.0
    %157 = vmatpush.msra.mxu0 0.0
    %158 = vmatpush.msra.mxu0 0.0
    %159 = vmatpush.msra.mxu0 0.0
    %160 = vmatpush.msra.mxu0 0.0
    %161 = vmatpush.msra.mxu0 0.0
    %162 = vmatpush.msra.mxu0 0.0
    %163 = vmatpush.msra.mxu0 0.0
    %164 = vmatpush.msra.mxu0 0.0
    %165 = vmatpush.msra.mxu0 0.0
    %166 = vmatpush.msra.mxu0 0.0
    %167 = vmatpush.msra.mxu0 0.0
    %v168 = vand.u32 %v31, 4294901760
    %v169 = vsub.f32 %v31, %v168
    %170 = vmatpush.msra.mxu0 %v169
    %v171 = vand.u32 %v54, 4294901760
    %v172 = vsub.f32 %v54, %v171
    %173 = vmatmul.f32.gmra.mxu0 %v172
    %v174 = vpop.f32.mrf.mxu0
    %v175 = vadd.f32 %v139, %v174
    %v176 = vand.u32 %v57, 4294901760
    %v177 = vsub.f32 %v57, %v176
    %178 = vmatmul.f32.gmra.mxu0 %v177
    %v179 = vpop.f32.mrf.mxu0
    %v180 = vadd.f32 %v143, %v179
    %v181 = vand.u32 %v60, 4294901760
    %v182 = vsub.f32 %v60, %v181
    %183 = vmatmul.f32.gmra.mxu0 %v182
    %v184 = vpop.f32.mrf.mxu0
    %v185 = vadd.f32 %v147, %v184
    %v186 = vand.u32 %v63, 4294901760
    %v187 = vsub.f32 %v63, %v186
    %188 = vmatmul.f32.gmra.mxu0 %v187
    %v189 = vpop.f32.mrf.mxu0
    %v190 = vadd.f32 %v151, %v189
    %191 = vdwg.mxu0
    %192 = vmatpush.msra.mxu0 0.0
    %193 = vmatpush.msra.mxu0 0.0
    %194 = vmatpush.msra.mxu0 0.0
    %195 = vmatpush.msra.mxu0 0.0
    %196 = vmatpush.msra.mxu0 0.0
    %197 = vmatpush.msra.mxu0 0.0
    %198 = vmatpush.msra.mxu0 0.0
    %199 = vmatpush.msra.mxu0 0.0
    %200 = vmatpush.msra.mxu0 0.0
    %201 = vmatpush.msra.mxu0 0.0
    %202 = vmatpush.msra.mxu0 0.0
    %203 = vmatpush.msra.mxu0 0.0
    %204 = vmatpush.msra.mxu0 0.0
    %205 = vmatpush.msra.mxu0 0.0
    %206 = vmatpush.msra.mxu0 0.0
    %v207 = vand.u32 %v31, 4294901760
    %208 = vmatpush.msra.mxu0 %v207
    %v209 = vand.u32 %v54, 4294901760
    %v210 = vsub.f32 %v54, %v209
    %v211 = vand.u32 %v210, 4294901760
    %212 = vmatmul.f32.gmra.mxu0 %v211
    %v213 = vpop.f32.mrf.mxu0
    %v214 = vadd.f32 %v175, %v213
    %v215 = vand.u32 %v57, 4294901760
    %v216 = vsub.f32 %v57, %v215
    %v217 = vand.u32 %v216, 4294901760
    %218 = vmatmul.f32.gmra.mxu0 %v217
    %v219 = vpop.f32.mrf.mxu0
    %v220 = vadd.f32 %v180, %v219
    %v221 = vand.u32 %v60, 4294901760
    %v222 = vsub.f32 %v60, %v221
    %v223 = vand.u32 %v222, 4294901760
    %224 = vmatmul.f32.gmra.mxu0 %v223
    %v225 = vpop.f32.mrf.mxu0
    %v226 = vadd.f32 %v185, %v225
    %v227 = vand.u32 %v63, 4294901760
    %v228 = vsub.f32 %v63, %v227
    %v229 = vand.u32 %v228, 4294901760
    %230 = vmatmul.f32.gmra.mxu0 %v229
    %v231 = vpop.f32.mrf.mxu0
    %v232 = vadd.f32 %v190, %v231
    %233 = vdwg.mxu0
    %234 = vmatpush.msra.mxu0 0.0
    %235 = vmatpush.msra.mxu0 0.0
    %236 = vmatpush.msra.mxu0 0.0
    %237 = vmatpush.msra.mxu0 0.0
    %238 = vmatpush.msra.mxu0 0.0
    %239 = vmatpush.msra.mxu0 0.0
    %240 = vmatpush.msra.mxu0 0.0
    %241 = vmatpush.msra.mxu0 0.0
    %242 = vmatpush.msra.mxu0 0.0
    %243 = vmatpush.msra.mxu0 0.0
    %244 = vmatpush.msra.mxu0 0.0
    %245 = vmatpush.msra.mxu0 0.0
    %246 = vmatpush.msra.mxu0 0.0
    %247 = vmatpush.msra.mxu0 0.0
    %248 = vmatpush.msra.mxu0 0.0
    %v249 = vand.u32 %v31, 4294901760
    %v250 = vsub.f32 %v31, %v249
    %v251 = vand.u32 %v250, 4294901760
    %252 = vmatpush.msra.mxu0 %v251
    %v253 = vand.u32 %v54, 4294901760
    %254 = vmatmul.f32.gmra.mxu0 %v253
    %v255 = vpop.f32.mrf.mxu0
    %v256 = vadd.f32 %v214, %v255
    %v257 = vand.u32 %v57, 4294901760
    %258 = vmatmul.f32.gmra.mxu0 %v257
    %v259 = vpop.f32.mrf.mxu0
    %v260 = vadd.f32 %v220, %v259
    %v261 = vand.u32 %v60, 4294901760
    %262 = vmatmul.f32.gmra.mxu0 %v261
    %v263 = vpop.f32.mrf.mxu0
    %v264 = vadd.f32 %v226, %v263
    %v265 = vand.u32 %v63, 4294901760
    %266 = vmatmul.f32.gmra.mxu0 %v265
    %v267 = vpop.f32.mrf.mxu0
    %v268 = vadd.f32 %v232, %v267
    %269 = vdwg.mxu0
    %270 = vmatpush.msra.mxu0 0.0
    %271 = vmatpush.msra.mxu0 0.0
    %272 = vmatpush.msra.mxu0 0.0
    %273 = vmatpush.msra.mxu0 0.0
    %274 = vmatpush.msra.mxu0 0.0
    %275 = vmatpush.msra.mxu0 0.0
    %276 = vmatpush.msra.mxu0 0.0
    %277 = vmatpush.msra.mxu0 0.0
    %278 = vmatpush.msra.mxu0 0.0
    %279 = vmatpush.msra.mxu0 0.0
    %280 = vmatpush.msra.mxu0 0.0
    %281 = vmatpush.msra.mxu0 0.0
    %282 = vmatpush.msra.mxu0 0.0
    %283 = vmatpush.msra.mxu0 0.0
    %284 = vmatpush.msra.mxu0 0.0
    %v285 = vand.u32 %v31, 4294901760
    %286 = vmatpush.msra.mxu0 %v285
    %v287 = vand.u32 %v54, 4294901760
    %288 = vmatmul.f32.gmra.mxu0 %v287
    %v289 = vpop.f32.mrf.mxu0
    %v290 = vadd.f32 %v256, %v289
    %v291 = vand.u32 %v57, 4294901760
    %292 = vmatmul.f32.gmra.mxu0 %v291
    %v293 = vpop.f32.mrf.mxu0
    %v294 = vadd.f32 %v260, %v293
    %v295 = vand.u32 %v60, 4294901760
    %296 = vmatmul.f32.gmra.mxu0 %v295
    %v297 = vpop.f32.mrf.mxu0
    %v298 = vadd.f32 %v264, %v297
    %v299 = vand.u32 %v63, 4294901760
    %300 = vmatmul.f32.gmra.mxu0 %v299
    %v301 = vpop.f32.mrf.mxu0
    %v302 = vadd.f32 %v268, %v301
    %303 = vdwg.mxu0
    %v304 = vmul.f32 %v290, 0.5
    %v305 = vmul.f32 %v294, 0.5
    %v306 = vmul.f32 %v298, 0.5
    %v307 = vmul.f32 %v302, 0.5
    %v308 = vtanh.pop %v304
    %v309 = vtanh.pop %v305
    %v310 = vtanh.pop %v306
    %v311 = vtanh.pop %v307
    %v312 = vmul.f32 %v308, 0.5
    %v313 = vmul.f32 %v309, 0.5
    %v314 = vmul.f32 %v310, 0.5
    %v315 = vmul.f32 %v311, 0.5
    %v316 = vadd.f32 %v312, 0.5
    %v317 = vadd.f32 %v313, 0.5
    %v318 = vadd.f32 %v314, 0.5
    %v319 = vadd.f32 %v315, 0.5
    %321 = vset.pattern.permute.xlu0 0
    %322 = vperm.xlu0 %321, %v30
    %v323 = vpop.permute.xlu0 %322
    %vm325 = vcmask 261120
    %v327 = vsel %vm325, %v29, 0
    %329 = vmatpush.msra.mxu0 0.0
    %330 = vmatpush.msra.mxu0 0.0
    %331 = vmatpush.msra.mxu0 0.0
    %332 = vmatpush.msra.mxu0 0.0
    %333 = vmatpush.msra.mxu0 0.0
    %334 = vmatpush.msra.mxu0 0.0
    %335 = vmatpush.msra.mxu0 0.0
    %336 = vmatpush.msra.mxu0 0.0
    %337 = vmatpush.msra.mxu0 0.0
    %338 = vmatpush.msra.mxu0 0.0
    %339 = vmatpush.msra.mxu0 0.0
    %340 = vmatpush.msra.mxu0 0.0
    %v341 = vand.u32 %v319, 4294901760
    %342 = vmatpush.msra.mxu0 %v341
    %v343 = vand.u32 %v318, 4294901760
    %344 = vmatpush.msra.mxu0 %v343
    %v345 = vand.u32 %v317, 4294901760
    %346 = vmatpush.msra.mxu0 %v345
    %v347 = vand.u32 %v316, 4294901760
    %348 = vmatpush.msra.mxu0 %v347
    %v349 = vand.u32 %v327, 4294901760
    %v350 = vsub.f32 %v327, %v349
    %v351 = vand.u32 %v350, 4294901760
    %v352 = vsub.f32 %v350, %v351
    %v353 = vand.u32 %v352, 4294901760
    %354 = vmatmul.f32.gmra.mxu0 %v353
    %v355 = vpop.f32.mrf.mxu0
    %v356 = vadd.f32 %v323, %v355
    %357 = vdwg.mxu0
    %358 = vmatpush.msra.mxu0 0.0
    %359 = vmatpush.msra.mxu0 0.0
    %360 = vmatpush.msra.mxu0 0.0
    %361 = vmatpush.msra.mxu0 0.0
    %362 = vmatpush.msra.mxu0 0.0
    %363 = vmatpush.msra.mxu0 0.0
    %364 = vmatpush.msra.mxu0 0.0
    %365 = vmatpush.msra.mxu0 0.0
    %366 = vmatpush.msra.mxu0 0.0
    %367 = vmatpush.msra.mxu0 0.0
    %368 = vmatpush.msra.mxu0 0.0
    %369 = vmatpush.msra.mxu0 0.0
    %v370 = vand.u32 %v319, 4294901760
    %v371 = vsub.f32 %v319, %v370
    %v372 = vand.u32 %v371, 4294901760
    %v373 = vsub.f32 %v371, %v372
    %v374 = vand.u32 %v373, 4294901760
    %375 = vmatpush.msra.mxu0 %v374
    %v376 = vand.u32 %v318, 4294901760
    %v377 = vsub.f32 %v318, %v376
    %v378 = vand.u32 %v377, 4294901760
    %v379 = vsub.f32 %v377, %v378
    %v380 = vand.u32 %v379, 4294901760
    %381 = vmatpush.msra.mxu0 %v380
    %v382 = vand.u32 %v317, 4294901760
    %v383 = vsub.f32 %v317, %v382
    %v384 = vand.u32 %v383, 4294901760
    %v385 = vsub.f32 %v383, %v384
    %v386 = vand.u32 %v385, 4294901760
    %387 = vmatpush.msra.mxu0 %v386
    %v388 = vand.u32 %v316, 4294901760
    %v389 = vsub.f32 %v316, %v388
    %v390 = vand.u32 %v389, 4294901760
    %v391 = vsub.f32 %v389, %v390
    %v392 = vand.u32 %v391, 4294901760
    %393 = vmatpush.msra.mxu0 %v392
    %v394 = vand.u32 %v327, 4294901760
    %395 = vmatmul.f32.gmra.mxu0 %v394
    %v396 = vpop.f32.mrf.mxu0
    %v397 = vadd.f32 %v356, %v396
    %398 = vdwg.mxu0
    %399 = vmatpush.msra.mxu0 0.0
    %400 = vmatpush.msra.mxu0 0.0
    %401 = vmatpush.msra.mxu0 0.0
    %402 = vmatpush.msra.mxu0 0.0
    %403 = vmatpush.msra.mxu0 0.0
    %404 = vmatpush.msra.mxu0 0.0
    %405 = vmatpush.msra.mxu0 0.0
    %406 = vmatpush.msra.mxu0 0.0
    %407 = vmatpush.msra.mxu0 0.0
    %408 = vmatpush.msra.mxu0 0.0
    %409 = vmatpush.msra.mxu0 0.0
    %410 = vmatpush.msra.mxu0 0.0
    %v411 = vand.u32 %v319, 4294901760
    %v412 = vsub.f32 %v319, %v411
    %413 = vmatpush.msra.mxu0 %v412
    %v414 = vand.u32 %v318, 4294901760
    %v415 = vsub.f32 %v318, %v414
    %416 = vmatpush.msra.mxu0 %v415
    %v417 = vand.u32 %v317, 4294901760
    %v418 = vsub.f32 %v317, %v417
    %419 = vmatpush.msra.mxu0 %v418
    %v420 = vand.u32 %v316, 4294901760
    %v421 = vsub.f32 %v316, %v420
    %422 = vmatpush.msra.mxu0 %v421
    %v423 = vand.u32 %v327, 4294901760
    %v424 = vsub.f32 %v327, %v423
    %425 = vmatmul.f32.gmra.mxu0 %v424
    %v426 = vpop.f32.mrf.mxu0
    %v427 = vadd.f32 %v397, %v426
    %428 = vdwg.mxu0
    %429 = vmatpush.msra.mxu0 0.0
    %430 = vmatpush.msra.mxu0 0.0
    %431 = vmatpush.msra.mxu0 0.0
    %432 = vmatpush.msra.mxu0 0.0
    %433 = vmatpush.msra.mxu0 0.0
    %434 = vmatpush.msra.mxu0 0.0
    %435 = vmatpush.msra.mxu0 0.0
    %436 = vmatpush.msra.mxu0 0.0
    %437 = vmatpush.msra.mxu0 0.0
    %438 = vmatpush.msra.mxu0 0.0
    %439 = vmatpush.msra.mxu0 0.0
    %440 = vmatpush.msra.mxu0 0.0
    %v441 = vand.u32 %v319, 4294901760
    %442 = vmatpush.msra.mxu0 %v441
    %v443 = vand.u32 %v318, 4294901760
    %444 = vmatpush.msra.mxu0 %v443
    %v445 = vand.u32 %v317, 4294901760
    %446 = vmatpush.msra.mxu0 %v445
    %v447 = vand.u32 %v316, 4294901760
    %448 = vmatpush.msra.mxu0 %v447
    %v449 = vand.u32 %v327, 4294901760
    %v450 = vsub.f32 %v327, %v449
    %v451 = vand.u32 %v450, 4294901760
    %452 = vmatmul.f32.gmra.mxu0 %v451
    %v453 = vpop.f32.mrf.mxu0
    %v454 = vadd.f32 %v427, %v453
    %455 = vdwg.mxu0
    %456 = vmatpush.msra.mxu0 0.0
    %457 = vmatpush.msra.mxu0 0.0
    %458 = vmatpush.msra.mxu0 0.0
    %459 = vmatpush.msra.mxu0 0.0
    %460 = vmatpush.msra.mxu0 0.0
    %461 = vmatpush.msra.mxu0 0.0
    %462 = vmatpush.msra.mxu0 0.0
    %463 = vmatpush.msra.mxu0 0.0
    %464 = vmatpush.msra.mxu0 0.0
    %465 = vmatpush.msra.mxu0 0.0
    %466 = vmatpush.msra.mxu0 0.0
    %467 = vmatpush.msra.mxu0 0.0
    %v468 = vand.u32 %v319, 4294901760
    %v469 = vsub.f32 %v319, %v468
    %v470 = vand.u32 %v469, 4294901760
    %471 = vmatpush.msra.mxu0 %v470
    %v472 = vand.u32 %v318, 4294901760
    %v473 = vsub.f32 %v318, %v472
    %v474 = vand.u32 %v473, 4294901760
    %475 = vmatpush.msra.mxu0 %v474
    %v476 = vand.u32 %v317, 4294901760
    %v477 = vsub.f32 %v317, %v476
    %v478 = vand.u32 %v477, 4294901760
    %479 = vmatpush.msra.mxu0 %v478
    %v480 = vand.u32 %v316, 4294901760
    %v481 = vsub.f32 %v316, %v480
    %v482 = vand.u32 %v481, 4294901760
    %483 = vmatpush.msra.mxu0 %v482
    %v484 = vand.u32 %v327, 4294901760
    %485 = vmatmul.f32.gmra.mxu0 %v484
    %v486 = vpop.f32.mrf.mxu0
    %v487 = vadd.f32 %v454, %v486
    %488 = vdwg.mxu0
    %489 = vmatpush.msra.mxu0 0.0
    %490 = vmatpush.msra.mxu0 0.0
    %491 = vmatpush.msra.mxu0 0.0
    %492 = vmatpush.msra.mxu0 0.0
    %493 = vmatpush.msra.mxu0 0.0
    %494 = vmatpush.msra.mxu0 0.0
    %495 = vmatpush.msra.mxu0 0.0
    %496 = vmatpush.msra.mxu0 0.0
    %497 = vmatpush.msra.mxu0 0.0
    %498 = vmatpush.msra.mxu0 0.0
    %499 = vmatpush.msra.mxu0 0.0
    %500 = vmatpush.msra.mxu0 0.0
    %v501 = vand.u32 %v319, 4294901760
    %502 = vmatpush.msra.mxu0 %v501
    %v503 = vand.u32 %v318, 4294901760
    %504 = vmatpush.msra.mxu0 %v503
    %v505 = vand.u32 %v317, 4294901760
    %506 = vmatpush.msra.mxu0 %v505
    %v507 = vand.u32 %v316, 4294901760
    %508 = vmatpush.msra.mxu0 %v507
    %v509 = vand.u32 %v327, 4294901760
    %510 = vmatmul.f32.gmra.mxu0 %v509
    %v511 = vpop.f32.mrf.mxu0
    %v512 = vadd.f32 %v487, %v511
    %513 = vdwg.mxu0
    %514 = vst [vmem:[#allocation2] sm:$0xf] %v512
    // Predicated region
    $region22: #{tpu_custom_call.1} parent=1 // pred_check
      _
    $region23: #{tpu_custom_call.1} parent=1 // pred_check_branch
      %516 = sbr.rel (0) target = $region25
    $region24: #{tpu_custom_call.1} parent=1 // pred_region
      %518 = vsyncadd [#allocation3], 0
      %s520 = sshll.u32 [#allocation2], 4
      %s521 = int_to_ptr.vmem [resolvable:$true] %s520
      %s522 = sshll.u32 %s5, 4
      %s523 = int_to_ptr.hbm [resolvable:$true] %s522
      %525 = dma.vmem_to_hbm [thread:$0]  %s521, 64, %s523, [#allocation3]
    $region25: #{tpu_custom_call.1} parent=1 // pred_fallthru
      _
    // Predicated region
    $region26: #{tpu_custom_call.1} parent=1 // pred_check
      _
    $region27: #{tpu_custom_call.1} parent=1 // pred_check_branch
      %527 = sbr.rel (0) target = $region29
    $region28: #{tpu_custom_call.1} parent=1 // pred_region
      %529 = dma.done [#allocation3], 64
    $region29: #{tpu_custom_call.1} parent=1 // pred_fallthru
      _
    %530 = vsyncpa [#allocation3], 1

</llo_original>
